<compile_context>
chip_gen: v7x
topology: tpu7x:2x2x1
jax: 0.10.0
libtpu: 0.0.40
codegen_flags: <defaults>
</compile_context>

<pallas_src>
import jax
import jax.numpy as jnp
from jax.experimental import pallas as pl
from jax.experimental.pallas import tpu as pltpu

PAD_CLS = 128  # lane-padded class width used ONLY for the in-kernel logsumexp math


def domain_classifier_kernel(x_ref, w1_ref, b1_ref, w2_ref, b2_ref, o_ref):
    # x:  (tm, 256)  f32 or bf16 (streamed per tile)
    # w1: (256, 128) same dtype as x (resident)
    # b1: (1, 128)   f32 (resident)
    # w2: (128, 128) f32, columns >= 2 are zero (resident)
    # b2: (1, 128)   f32, columns >= 2 are -1e30 (resident)
    # o:  (tm, 2)    f32 log-probabilities
    x = x_ref[...]

    # fc1 + ReLU (MXU matmul with f32 accumulation; element-wise math in f32)
    h = jnp.dot(x, w1_ref[...], preferred_element_type=jnp.float32) + b1_ref[...]
    h = jnp.maximum(h, 0.0)

    # fc2 on a lane-dense 128-wide slab; padded columns get logit ~ -1e30
    logits = jnp.dot(h, w2_ref[...], preferred_element_type=jnp.float32) + b2_ref[...]

    # numerically stable log_softmax over the class axis; padded columns underflow to 0
    m = jnp.max(logits, axis=-1, keepdims=True)
    shifted = logits - m
    lse = jnp.log(jnp.sum(jnp.exp(shifted), axis=-1, keepdims=True))
    out = shifted - lse

    # store only the real class columns (narrow lane-masked store; negligible vst cost)
    o_ref[...] = out[:, : o_ref.shape[1]].astype(o_ref.dtype)


def _round_up(n, m):
    return ((n + m - 1) // m) * m


def domain_classifier_forward(x, w1, b1, w2, b2, constant=1.0, *, tm=4096):
    """Forward pass of Domain_classifier.

    x  : (B, 256)  f32 or bf16 (streamed in whatever dtype the producer supplies)
    w1 : (256, 128)  (transposed vs. PyTorch's (128, 256))
    b1 : (128,)
    w2 : (128, 2)    (transposed vs. PyTorch's (2, 128))
    b2 : (2,)
    constant : grad-reverse scale; GradReverse forward is identity -> unused here.
    tm : batch tile (rows per grid step); rounded to a multiple of 8 and capped so the
         grid has >= 2 steps whenever B > 8.
    """
    del constant  # GradReverse forward is identity
    B, IN = x.shape
    HID = w1.shape[1]
    OUT = w2.shape[1]

    # Weights are tiny and VMEM-resident: one-time cast of w1 to x's streaming dtype is fine.
    w1 = w1.astype(x.dtype)
    b1_2d = b1.reshape(1, HID).astype(jnp.float32)

    # Pad fc2 params to a 128-lane slab for the in-kernel logsumexp (zero weights, -1e30 pad
    # bias so padded logits contribute nothing).  The kernel OUTPUT stays (B, OUT).
    w2p = jnp.zeros((HID, PAD_CLS), jnp.float32).at[:, :OUT].set(w2.astype(jnp.float32))
    b2p = jnp.full((1, PAD_CLS), -1e30, jnp.float32).at[0, :OUT].set(b2.astype(jnp.float32))

    # Batch tile: multiple of 8 sublanes; cap at ~ceil(B/2) (rounded to 8) so the grid has
    # at least 2 steps when B > 8 (v7x megacore gets both TensorCores busy).
    tm = max(8, (int(tm) // 8) * 8)
    tm = min(tm, max(8, _round_up(pl.cdiv(B, 2), 8)))
    num_tiles = pl.cdiv(B, tm)  # no wrapper padding; Pallas masks the partial edge tile

    x_item = jnp.dtype(x.dtype).itemsize
    w_bytes = IN * HID * x_item + HID * 4 + HID * PAD_CLS * 4 + PAD_CLS * 4
    # double-buffered x + out tiles, weights, plus headroom; capped at v7x physical VMEM
    vmem_limit = int(min(
        4 * tm * IN * x_item + 4 * tm * OUT * 4 + 4 * w_bytes + (4 << 20),
        64 * 1024 * 1024))

    cost = pl.CostEstimate(
        flops=2 * B * IN * HID + 2 * B * HID * PAD_CLS,
        transcendentals=B * (PAD_CLS + 1),
        bytes_accessed=B * IN * x_item + w_bytes + B * OUT * 4,
    )

    return pl.pallas_call(
        domain_classifier_kernel,
        out_shape=jax.ShapeDtypeStruct((B, OUT), jnp.float32),
        grid=(num_tiles,),
        in_specs=[
            pl.BlockSpec((tm, IN), lambda i: (i, 0)),         # x: streamed per batch tile
            pl.BlockSpec((IN, HID), lambda i: (0, 0)),        # w1: resident
            pl.BlockSpec((1, HID), lambda i: (0, 0)),         # b1: resident
            pl.BlockSpec((HID, PAD_CLS), lambda i: (0, 0)),   # w2 (padded): resident
            pl.BlockSpec((1, PAD_CLS), lambda i: (0, 0)),     # b2 (padded): resident
        ],
        out_specs=pl.BlockSpec((tm, OUT), lambda i: (i, 0)),  # narrow (tm, 2) output
        compiler_params=pltpu.CompilerParams(
            dimension_semantics=("parallel",),
            vmem_limit_bytes=vmem_limit,
        ),
        cost_estimate=cost,
    )(x, w1, b1_2d, w2p, b2p)


def _reference_forward(x, w1, b1, w2, b2):
    h = jnp.maximum(x.astype(jnp.float32) @ w1 + b1, 0.0)
    logits = h @ w2 + b2
    return jax.nn.log_softmax(logits, axis=1)


if __name__ == "__main__":
    key = jax.random.PRNGKey(0)
    k_x, k_w1, k_b1, k_w2, k_b2 = jax.random.split(key, 5)

    IN, HID, OUT = 256, 128, 2

    # Deterministic parameter init (nn.Linear-style uniform bounds)
    bound1 = 1.0 / (IN ** 0.5)
    w1 = jax.random.uniform(k_w1, (IN, HID), jnp.float32, -bound1, bound1)
    b1 = jax.random.uniform(k_b1, (HID,), jnp.float32, -bound1, bound1)
    bound2 = 1.0 / (HID ** 0.5)
    w2 = jax.random.uniform(k_w2, (HID, OUT), jnp.float32, -bound2, bound2)
    b2 = jax.random.uniform(k_b2, (OUT,), jnp.float32, -bound2, bound2)

    # --- Test 1: small batch (single tile), f32, tight tolerance ---
    B = 8
    x = jax.random.normal(k_x, (B, IN), dtype=jnp.float32)
    out = jax.block_until_ready(domain_classifier_forward(x, w1, b1, w2, b2, constant=0.5))
    ref = _reference_forward(x, w1, b1, w2, b2)
    assert out.shape == (B, OUT)
    assert jnp.allclose(out, ref, atol=1e-5, rtol=1e-5), "f32 single-tile mismatch"

    # --- Test 2: explicit small tile -> multi-tile grid with a partial edge tile ---
    B2 = 40
    x2 = jax.random.normal(k_x, (B2, IN), dtype=jnp.float32)
    out2 = jax.block_until_ready(
        domain_classifier_forward(x2, w1, b1, w2, b2, constant=1.0, tm=16))
    ref2 = _reference_forward(x2, w1, b1, w2, b2)
    assert out2.shape == (B2, OUT)
    assert jnp.allclose(out2, ref2, atol=1e-5, rtol=1e-5), "multi-tile mismatch"

    # --- Test 3: default tile (clamped to ~B/2 -> 2 grid steps for v7x megacore) ---
    out2b = jax.block_until_ready(domain_classifier_forward(x2, w1, b1, w2, b2))
    assert out2b.shape == (B2, OUT)
    assert jnp.allclose(out2b, ref2, atol=1e-5, rtol=1e-5), "default-tile mismatch"

    # --- Test 4: x already produced in bf16 upstream (kernel streams bf16 directly) ---
    out3 = jax.block_until_ready(
        domain_classifier_forward(x.astype(jnp.bfloat16), w1, b1, w2, b2))
    assert out3.shape == (B, OUT)
    assert jnp.allclose(out3, ref, atol=5e-2, rtol=5e-2), "bf16 mismatch"

    print("KERNEL_OK")
</pallas_src>

<mosaic_0001>
module attributes {stable_mosaic.version = 11 : i64} {
  func.func @domain_classifier_kernel(%arg0: i32, %arg1: memref<8x256xf32, #tpu.memory_space<vmem>>, %arg2: memref<256x128xf32, #tpu.memory_space<vmem>>, %arg3: memref<1x128xf32, #tpu.memory_space<vmem>>, %arg4: memref<128x128xf32, #tpu.memory_space<vmem>>, %arg5: memref<1x128xf32, #tpu.memory_space<vmem>>, %arg6: memref<8x2xf32, #tpu.memory_space<vmem>>) attributes {dimension_semantics = [#tpu.dimension_semantics<parallel>], iteration_bounds = array<i64: 1>, scalar_prefetch = 0 : i64, scratch_operands = 0 : i64, tpu.core_type = #tpu.core_type<tc>, window_params = [{transform_indices = @transform_0, window_bounds = array<i64: 8, 256>}, {pipeline_mode = #tpu.pipeline_mode<synchronous>, transform_indices = @transform_1, window_bounds = array<i64: 256, 128>}, {pipeline_mode = #tpu.pipeline_mode<synchronous>, transform_indices = @transform_2, window_bounds = array<i64: 1, 128>}, {pipeline_mode = #tpu.pipeline_mode<synchronous>, transform_indices = @transform_3, window_bounds = array<i64: 128, 128>}, {pipeline_mode = #tpu.pipeline_mode<synchronous>, transform_indices = @transform_4, window_bounds = array<i64: 1, 128>}, {transform_indices = @transform_5, window_bounds = array<i64: 8, 2>}]} {
    %c0 = arith.constant 0 : index
    %c0_0 = arith.constant 0 : index
    %0 = vector.load %arg1[%c0, %c0_0] : memref<8x256xf32, #tpu.memory_space<vmem>>, vector<8x256xf32>
    %c0_1 = arith.constant 0 : index
    %c0_2 = arith.constant 0 : index
    %1 = vector.load %arg2[%c0_1, %c0_2] : memref<256x128xf32, #tpu.memory_space<vmem>>, vector<256x128xf32>
    %cst = arith.constant dense<0.000000e+00> : vector<8x128xf32>
    %2 = tpu.matmul %0, %1, %cst {dimension_numbers = #tpu.dot_dimension_numbers<[1], [0], [0], [1], [0, 0, 1, 1], [], []>} : vector<8x256xf32>, vector<256x128xf32>, vector<8x128xf32> -> vector<8x128xf32>
    %c0_3 = arith.constant 0 : index
    %c0_4 = arith.constant 0 : index
    %3 = vector.load %arg3[%c0_3, %c0_4] : memref<1x128xf32, #tpu.memory_space<vmem>>, vector<1x128xf32>
    %4 = vector.broadcast %3 : vector<1x128xf32> to vector<8x128xf32>
    %5 = arith.addf %2, %4 : vector<8x128xf32>
    %cst_5 = arith.constant 0.000000e+00 : f32
    %6 = vector.broadcast %cst_5 : f32 to vector<8x128xf32>
    %7 = arith.maximumf %5, %6 : vector<8x128xf32>
    %c0_6 = arith.constant 0 : index
    %c0_7 = arith.constant 0 : index
    %8 = vector.load %arg4[%c0_6, %c0_7] : memref<128x128xf32, #tpu.memory_space<vmem>>, vector<128x128xf32>
    %cst_8 = arith.constant dense<0.000000e+00> : vector<8x128xf32>
    %9 = tpu.matmul %7, %8, %cst_8 {dimension_numbers = #tpu.dot_dimension_numbers<[1], [0], [0], [1], [0, 0, 1, 1], [], []>} : vector<8x128xf32>, vector<128x128xf32>, vector<8x128xf32> -> vector<8x128xf32>
    %c0_9 = arith.constant 0 : index
    %c0_10 = arith.constant 0 : index
    %10 = vector.load %arg5[%c0_9, %c0_10] : memref<1x128xf32, #tpu.memory_space<vmem>>, vector<1x128xf32>
    %11 = vector.broadcast %10 : vector<1x128xf32> to vector<8x128xf32>
    %12 = arith.addf %9, %11 : vector<8x128xf32>
    %cst_11 = arith.constant dense<0xFF800000> : vector<8xf32>
    %13 = vector.multi_reduction <maximumf>, %12, %cst_11 [1] : vector<8x128xf32> to vector<8xf32>
    %14 = vector.shape_cast %13 : vector<8xf32> to vector<8x1xf32>
    %15 = vector.broadcast %14 : vector<8x1xf32> to vector<8x128xf32>
    %16 = arith.subf %12, %15 : vector<8x128xf32>
    %17 = math.exp %16 : vector<8x128xf32>
    %cst_12 = arith.constant dense<0.000000e+00> : vector<8xf32>
    %18 = vector.multi_reduction <add>, %17, %cst_12 [1] : vector<8x128xf32> to vector<8xf32>
    %19 = vector.shape_cast %18 : vector<8xf32> to vector<8x1xf32>
    %20 = math.log %19 : vector<8x1xf32>
    %21 = vector.broadcast %20 : vector<8x1xf32> to vector<8x128xf32>
    %22 = arith.subf %16, %21 : vector<8x128xf32>
    %23 = vector.extract_strided_slice %22 {offsets = [0, 0], sizes = [8, 2], strides = [1, 1]} : vector<8x128xf32> to vector<8x2xf32>
    %c0_13 = arith.constant 0 : index
    %c0_14 = arith.constant 0 : index
    %24 = vector.load %arg6[%c0_13, %c0_14] : memref<8x2xf32, #tpu.memory_space<vmem>>, vector<8x2xf32>
    tpu.vector_store %arg6[%c0_13, %c0_14], %23 {strides = array<i32>} : memref<8x2xf32, #tpu.memory_space<vmem>>, vector<8x2xf32>,
    return
  }
  func.func @transform_0(%arg0: i32) -> (i32, i32) {
    %c0_i32 = arith.constant 0 : i32
    %c0_i32_0 = arith.constant 0 : i32
    return %arg0, %c0_i32 : i32, i32
  }
  func.func @transform_1(%arg0: i32) -> (i32, i32) {
    %c0_i32 = arith.constant 0 : i32
    %c0_i32_0 = arith.constant 0 : i32
    %c0_i32_1 = arith.constant 0 : i32
    return %c0_i32, %c0_i32_0 : i32, i32
  }
  func.func @transform_2(%arg0: i32) -> (i32, i32) {
    %c0_i32 = arith.constant 0 : i32
    %c0_i32_0 = arith.constant 0 : i32
    %c0_i32_1 = arith.constant 0 : i32
    return %c0_i32, %c0_i32_0 : i32, i32
  }
  func.func @transform_3(%arg0: i32) -> (i32, i32) {
    %c0_i32 = arith.constant 0 : i32
    %c0_i32_0 = arith.constant 0 : i32
    %c0_i32_1 = arith.constant 0 : i32
    return %c0_i32, %c0_i32_0 : i32, i32
  }
  func.func @transform_4(%arg0: i32) -> (i32, i32) {
    %c0_i32 = arith.constant 0 : i32
    %c0_i32_0 = arith.constant 0 : i32
    %c0_i32_1 = arith.constant 0 : i32
    return %c0_i32, %c0_i32_0 : i32, i32
  }
  func.func @transform_5(%arg0: i32) -> (i32, i32) {
    %c0_i32 = arith.constant 0 : i32
    %c0_i32_0 = arith.constant 0 : i32
    return %arg0, %c0_i32 : i32, i32
  }
}

</mosaic_0001>

<llo_original>
// kernel: tpu_custom_call.1
$region0: #{tpu_custom_call.1}
  #allocation0 [shape = 'u32[]', space=smem, size = 0x4, offset = 0x4, fixed_abs, tag = 'smem constant byte address 0x4 - core index']
  #allocation1 [shape = 'u32[144,128]{1,0:T(1,128)}', space=vmem, size = 0x12000, scoped, tag = 'internal scratch']
  %s0 = inlined_call_operand.hbm [shape: f32[8,256], index: 0, kind: input, shape index: {}]
  %s1 = inlined_call_operand.hbm [shape: f32[256,128], index: 1, kind: input, shape index: {}]
  %s2 = inlined_call_operand.vmem [shape: f32[1,128], index: 2, kind: input, shape index: {}]
  %s3 = inlined_call_operand.hbm [shape: f32[128,128], index: 3, kind: input, shape index: {}]
  %s4 = inlined_call_operand.vmem [shape: f32[1,128], index: 4, kind: input, shape index: {}]
  %s5 = inlined_call_operand.vmem [shape: f32[8,2], index: 5, kind: output, shape index: {}]
  %s6 = sld [smem:[#allocation0]]
  $region42: #{tpu_custom_call.1} parent=0
    _
  %s8 = ssub.s32 1, %s6
  %s9 = scalar_select 0, %s8, %s6
  $region1: #{tpu_custom_call.1} parent=0
    #allocation2 [shape = 'u8[8192]{0}', space=vmem, size = 0x2000, scoped, tag = 'input window, operand 0, single buffered']
    #allocation3 [shape = 's32[1]{0}', space=sflag, size = 0x4, scoped, tag = 'scoped memory for tpu_custom_call.1']
    #allocation4 [shape = 'u8[131072]{0}', space=vmem, size = 0x20000, scoped, tag = 'input window, operand 1, single buffered']
    #allocation5 [shape = 's32[1]{0}', space=sflag, size = 0x4, scoped, tag = 'scoped memory for tpu_custom_call.1']
    #allocation6 [shape = 'u8[65536]{0}', space=vmem, size = 0x10000, scoped, tag = 'input window, operand 3, single buffered']
    %10 = vsyncpa [#allocation3], 0
    %11 = vsyncpa [#allocation5], 0
    // Predicated region
    $region2: #{tpu_custom_call.1} parent=1 // pred_check
      _
    $region3: #{tpu_custom_call.1} parent=1 // pred_check_branch
      %13 = sbr.rel (0) target = $region5
    $region4: #{tpu_custom_call.1} parent=1 // pred_region
      %s15 = ssub.s32 256, 256
      %16 = vsyncadd [#allocation3], %s15
      %s18 = sshll.u32 [#allocation2], 4
      %s19 = int_to_ptr.vmem [resolvable:$true] %s18
      %21 = dma.hbm_to_vmem [thread:$0]  %s0, 256, %s19, [#allocation3]
    $region5: #{tpu_custom_call.1} parent=1 // pred_fallthru
      _
    // Predicated region
    $region6: #{tpu_custom_call.1} parent=1 // pred_check
      _
    $region7: #{tpu_custom_call.1} parent=1 // pred_check_branch
      %23 = sbr.rel (0) target = $region9
    $region8: #{tpu_custom_call.1} parent=1 // pred_region
      %s25 = ssub.s32 4096, 4096
      %26 = vsyncadd [#allocation5], %s25
      %s27 = sshll.u32 [#allocation4], 4
      %s28 = int_to_ptr.vmem [resolvable:$true] %s27
      %33 = dma.hbm_to_vmem [thread:$0]  %s1, 4096, %s28, [#allocation5], 128, 128, 8
    $region9: #{tpu_custom_call.1} parent=1 // pred_fallthru
      _
    // Predicated region
    $region10: #{tpu_custom_call.1} parent=1 // pred_check
      _
    $region11: #{tpu_custom_call.1} parent=1 // pred_check_branch
      %35 = sbr.rel (0) target = $region13
    $region12: #{tpu_custom_call.1} parent=1 // pred_region
      _
    $region13: #{tpu_custom_call.1} parent=1 // pred_fallthru
      _
    // Predicated region
    $region14: #{tpu_custom_call.1} parent=1 // pred_check
      _
    $region15: #{tpu_custom_call.1} parent=1 // pred_check_branch
      %37 = sbr.rel (0) target = $region17
    $region16: #{tpu_custom_call.1} parent=1 // pred_region
      %s39 = ssub.s32 2048, 2048
      %40 = vsyncadd [#allocation5], %s39
      %s41 = sshll.u32 [#allocation6], 4
      %s42 = int_to_ptr.vmem [resolvable:$true] %s41
      %47 = dma.hbm_to_vmem [thread:$0]  %s3, 2048, %s42, [#allocation5], 128, 128, 8
    $region17: #{tpu_custom_call.1} parent=1 // pred_fallthru
      _
    // Predicated region
    $region18: #{tpu_custom_call.1} parent=1 // pred_check
      _
    $region19: #{tpu_custom_call.1} parent=1 // pred_check_branch
      %49 = sbr.rel (0) target = $region21
    $region20: #{tpu_custom_call.1} parent=1 // pred_region
      _
    $region21: #{tpu_custom_call.1} parent=1 // pred_fallthru
      _
    // Predicated region
    $region22: #{tpu_custom_call.1} parent=1 // pred_check
      _
    $region23: #{tpu_custom_call.1} parent=1 // pred_check_branch
      %51 = sbr.rel (0) target = $region25
    $region24: #{tpu_custom_call.1} parent=1 // pred_region
      %52 = dma.done [#allocation3], 256
    $region25: #{tpu_custom_call.1} parent=1 // pred_fallthru
      _
    // Predicated region
    $region26: #{tpu_custom_call.1} parent=1 // pred_check
      _
    $region27: #{tpu_custom_call.1} parent=1 // pred_check_branch
      %54 = sbr.rel (0) target = $region29
    $region28: #{tpu_custom_call.1} parent=1 // pred_region
      %55 = dma.done [#allocation5], 4096
    $region29: #{tpu_custom_call.1} parent=1 // pred_fallthru
      _
    // Predicated region
    $region30: #{tpu_custom_call.1} parent=1 // pred_check
      _
    $region31: #{tpu_custom_call.1} parent=1 // pred_check_branch
      %57 = sbr.rel (0) target = $region33
    $region32: #{tpu_custom_call.1} parent=1 // pred_region
      %58 = dma.done [#allocation5], 2048
    $region33: #{tpu_custom_call.1} parent=1 // pred_fallthru
      _
    %v59 = vld [vmem:[#allocation2] sm:$0xff]
    %v60 = vld [vmem:[#allocation2 + $0x8] sm:$0xff]
    %v61 = vld [vmem:[#allocation4] sm:$0xff]
    %v62 = vld [vmem:[#allocation4 + $0x8] sm:$0xff]
    %v63 = vld [vmem:[#allocation4 + $0x10] sm:$0xff]
    %v64 = vld [vmem:[#allocation4 + $0x18] sm:$0xff]
    %v65 = vld [vmem:[#allocation4 + $0x20] sm:$0xff]
    %v66 = vld [vmem:[#allocation4 + $0x28] sm:$0xff]
    %v67 = vld [vmem:[#allocation4 + $0x30] sm:$0xff]
    %v68 = vld [vmem:[#allocation4 + $0x38] sm:$0xff]
    %v69 = vld [vmem:[#allocation4 + $0x40] sm:$0xff]
    %v70 = vld [vmem:[#allocation4 + $0x48] sm:$0xff]
    %v71 = vld [vmem:[#allocation4 + $0x50] sm:$0xff]
    %v72 = vld [vmem:[#allocation4 + $0x58] sm:$0xff]
    %v73 = vld [vmem:[#allocation4 + $0x60] sm:$0xff]
    %v74 = vld [vmem:[#allocation4 + $0x68] sm:$0xff]
    %v75 = vld [vmem:[#allocation4 + $0x70] sm:$0xff]
    %v76 = vld [vmem:[#allocation4 + $0x78] sm:$0xff]
    %v77 = vld [vmem:[#allocation4 + $0x80] sm:$0xff]
    %v78 = vld [vmem:[#allocation4 + $0x88] sm:$0xff]
    %v79 = vld [vmem:[#allocation4 + $0x90] sm:$0xff]
    %v80 = vld [vmem:[#allocation4 + $0x98] sm:$0xff]
    %v81 = vld [vmem:[#allocation4 + $0xa0] sm:$0xff]
    %v82 = vld [vmem:[#allocation4 + $0xa8] sm:$0xff]
    %v83 = vld [vmem:[#allocation4 + $0xb0] sm:$0xff]
    %v84 = vld [vmem:[#allocation4 + $0xb8] sm:$0xff]
    %v85 = vld [vmem:[#allocation4 + $0xc0] sm:$0xff]
    %v86 = vld [vmem:[#allocation4 + $0xc8] sm:$0xff]
    %v87 = vld [vmem:[#allocation4 + $0xd0] sm:$0xff]
    %v88 = vld [vmem:[#allocation4 + $0xd8] sm:$0xff]
    %v89 = vld [vmem:[#allocation4 + $0xe0] sm:$0xff]
    %v90 = vld [vmem:[#allocation4 + $0xe8] sm:$0xff]
    %v91 = vld [vmem:[#allocation4 + $0xf0] sm:$0xff]
    %v92 = vld [vmem:[#allocation4 + $0xf8] sm:$0xff]
    %v93 = vld [vmem:[%s2] sm:$0x1]
    %v95 = vlaneseq
    %v96 = vshrl.u32 %v95, 7
    %v97 = vsub.s32 0, %v96
    %v98 = vrot.slane %v93, %v97
    %100 = vmatprep.subr.mxu0 0.0
    %101 = vmatpush1.msra.mxu0 %v61
    %102 = vmatprep.subr.mxu0 0.0
    %103 = vmatpush1.msra.mxu0 %v62
    %104 = vmatprep.subr.mxu0 0.0
    %105 = vmatpush1.msra.mxu0 %v63
    %106 = vmatprep.subr.mxu0 0.0
    %107 = vmatpush1.msra.mxu0 %v64
    %108 = vmatprep.subr.mxu0 0.0
    %109 = vmatpush1.msra.mxu0 %v65
    %110 = vmatprep.subr.mxu0 0.0
    %111 = vmatpush1.msra.mxu0 %v66
    %112 = vmatprep.subr.mxu0 0.0
    %113 = vmatpush1.msra.mxu0 %v67
    %114 = vmatprep.subr.mxu0 0.0
    %115 = vmatpush1.msra.mxu0 %v68
    %116 = vmatprep.subr.mxu0 0.0
    %117 = vmatpush1.msra.mxu0 %v69
    %118 = vmatprep.subr.mxu0 0.0
    %119 = vmatpush1.msra.mxu0 %v70
    %120 = vmatprep.subr.mxu0 0.0
    %121 = vmatpush1.msra.mxu0 %v71
    %122 = vmatprep.subr.mxu0 0.0
    %123 = vmatpush1.msra.mxu0 %v72
    %124 = vmatprep.subr.mxu0 0.0
    %125 = vmatpush1.msra.mxu0 %v73
    %126 = vmatprep.subr.mxu0 0.0
    %127 = vmatpush1.msra.mxu0 %v74
    %128 = vmatprep.subr.mxu0 0.0
    %129 = vmatpush1.msra.mxu0 %v75
    %130 = vmatprep.subr.mxu0 0.0
    %131 = vmatpush1.msra.mxu0 %v76
    %132 = vmatprep.subr.mxu0 0.0
    %133 = vmatpush1.msra.mxu0 %v77
    %134 = vmatprep.subr.mxu0 0.0
    %135 = vmatpush1.msra.mxu0 %v78
    %136 = vmatprep.subr.mxu0 0.0
    %137 = vmatpush1.msra.mxu0 %v79
    %138 = vmatprep.subr.mxu0 0.0
    %139 = vmatpush1.msra.mxu0 %v80
    %140 = vmatprep.subr.mxu0 0.0
    %141 = vmatpush1.msra.mxu0 %v81
    %142 = vmatprep.subr.mxu0 0.0
    %143 = vmatpush1.msra.mxu0 %v82
    %144 = vmatprep.subr.mxu0 0.0
    %145 = vmatpush1.msra.mxu0 %v83
    %146 = vmatprep.subr.mxu0 0.0
    %147 = vmatpush1.msra.mxu0 %v84
    %148 = vmatprep.subr.mxu0 0.0
    %149 = vmatpush1.msra.mxu0 %v85
    %150 = vmatprep.subr.mxu0 0.0
    %151 = vmatpush1.msra.mxu0 %v86
    %152 = vmatprep.subr.mxu0 0.0
    %153 = vmatpush1.msra.mxu0 %v87
    %154 = vmatprep.subr.mxu0 0.0
    %155 = vmatpush1.msra.mxu0 %v88
    %156 = vmatprep.subr.mxu0 0.0
    %157 = vmatpush1.msra.mxu0 %v89
    %158 = vmatprep.subr.mxu0 0.0
    %159 = vmatpush1.msra.mxu0 %v90
    %160 = vmatprep.subr.mxu0 0.0
    %161 = vmatpush1.msra.mxu0 %v91
    %162 = vmatprep.subr.mxu0 0.0
    %163 = vmatpush1.msra.mxu0 %v92
    %164 = vmatprep.mubr.f32.mxu0 %v60
    %165 = vmatmul.mubr.f32.gmra.mrb[0].mxu0 %v59
    %v166 = vpop.f32.mrb[0].mxu0
    %v167 = vadd.f32 %v98, %v166
    %v168 = vpop.f32.mrb[0].mxu0
    %169 = vdwg.mxu0
    %v170 = vmax.f32 %v167, 0.0
    %v171 = vld [vmem:[#allocation6] sm:$0xff]
    %v172 = vld [vmem:[#allocation6 + $0x8] sm:$0xff]
    %v173 = vld [vmem:[#allocation6 + $0x10] sm:$0xff]
    %v174 = vld [vmem:[#allocation6 + $0x18] sm:$0xff]
    %v175 = vld [vmem:[#allocation6 + $0x20] sm:$0xff]
    %v176 = vld [vmem:[#allocation6 + $0x28] sm:$0xff]
    %v177 = vld [vmem:[#allocation6 + $0x30] sm:$0xff]
    %v178 = vld [vmem:[#allocation6 + $0x38] sm:$0xff]
    %v179 = vld [vmem:[#allocation6 + $0x40] sm:$0xff]
    %v180 = vld [vmem:[#allocation6 + $0x48] sm:$0xff]
    %v181 = vld [vmem:[#allocation6 + $0x50] sm:$0xff]
    %v182 = vld [vmem:[#allocation6 + $0x58] sm:$0xff]
    %v183 = vld [vmem:[#allocation6 + $0x60] sm:$0xff]
    %v184 = vld [vmem:[#allocation6 + $0x68] sm:$0xff]
    %v185 = vld [vmem:[#allocation6 + $0x70] sm:$0xff]
    %v186 = vld [vmem:[#allocation6 + $0x78] sm:$0xff]
    %v187 = vld [vmem:[%s4] sm:$0x1]
    %v189 = vlaneseq
    %v190 = vshrl.u32 %v189, 7
    %v191 = vsub.s32 0, %v190
    %v192 = vrot.slane %v187, %v191
    %194 = vmatprep.subr.mxu0 0.0
    %195 = vmatpush1.msra.mxu0 %v171
    %196 = vmatprep.subr.mxu0 0.0
    %197 = vmatpush1.msra.mxu0 %v172
    %198 = vmatprep.subr.mxu0 0.0
    %199 = vmatpush1.msra.mxu0 %v173
    %200 = vmatprep.subr.mxu0 0.0
    %201 = vmatpush1.msra.mxu0 %v174
    %202 = vmatprep.subr.mxu0 0.0
    %203 = vmatpush1.msra.mxu0 %v175
    %204 = vmatprep.subr.mxu0 0.0
    %205 = vmatpush1.msra.mxu0 %v176
    %206 = vmatprep.subr.mxu0 0.0
    %207 = vmatpush1.msra.mxu0 %v177
    %208 = vmatprep.subr.mxu0 0.0
    %209 = vmatpush1.msra.mxu0 %v178
    %210 = vmatprep.subr.mxu0 0.0
    %211 = vmatpush1.msra.mxu0 %v179
    %212 = vmatprep.subr.mxu0 0.0
    %213 = vmatpush1.msra.mxu0 %v180
    %214 = vmatprep.subr.mxu0 0.0
    %215 = vmatpush1.msra.mxu0 %v181
    %216 = vmatprep.subr.mxu0 0.0
    %217 = vmatpush1.msra.mxu0 %v182
    %218 = vmatprep.subr.mxu0 0.0
    %219 = vmatpush1.msra.mxu0 %v183
    %220 = vmatprep.subr.mxu0 0.0
    %221 = vmatpush1.msra.mxu0 %v184
    %222 = vmatprep.subr.mxu0 0.0
    %223 = vmatpush1.msra.mxu0 %v185
    %224 = vmatprep.subr.mxu0 0.0
    %225 = vmatpush1.msra.mxu0 %v186
    %226 = vmatprep.subr.mxu0 0.0
    %227 = vmatpush1.msra.mxu0 0.0
    %228 = vmatprep.subr.mxu0 0.0
    %229 = vmatpush1.msra.mxu0 0.0
    %230 = vmatprep.subr.mxu0 0.0
    %231 = vmatpush1.msra.mxu0 0.0
    %232 = vmatprep.subr.mxu0 0.0
    %233 = vmatpush1.msra.mxu0 0.0
    %234 = vmatprep.subr.mxu0 0.0
    %235 = vmatpush1.msra.mxu0 0.0
    %236 = vmatprep.subr.mxu0 0.0
    %237 = vmatpush1.msra.mxu0 0.0
    %238 = vmatprep.subr.mxu0 0.0
    %239 = vmatpush1.msra.mxu0 0.0
    %240 = vmatprep.subr.mxu0 0.0
    %241 = vmatpush1.msra.mxu0 0.0
    %242 = vmatprep.subr.mxu0 0.0
    %243 = vmatpush1.msra.mxu0 0.0
    %244 = vmatprep.subr.mxu0 0.0
    %245 = vmatpush1.msra.mxu0 0.0
    %246 = vmatprep.subr.mxu0 0.0
    %247 = vmatpush1.msra.mxu0 0.0
    %248 = vmatprep.subr.mxu0 0.0
    %249 = vmatpush1.msra.mxu0 0.0
    %250 = vmatprep.subr.mxu0 0.0
    %251 = vmatpush1.msra.mxu0 0.0
    %252 = vmatprep.subr.mxu0 0.0
    %253 = vmatpush1.msra.mxu0 0.0
    %254 = vmatprep.subr.mxu0 0.0
    %255 = vmatpush1.msra.mxu0 0.0
    %256 = vmatprep.subr.mxu0 0.0
    %257 = vmatpush1.msra.mxu0 0.0
    %258 = vmatprep.mubr.f32.mxu0 0.0
    %259 = vmatmul.mubr.f32.gmra.mrb[0].mxu0 %v170
    %v260 = vpop.f32.mrb[0].mxu0
    %v261 = vadd.f32 %v192, %v260
    %v262 = vpop.f32.mrb[0].mxu0
    %263 = vdwg.mxu0
    %264 = vmax.xlane.f32.xlu0 %v261
    %v265 = vpop.xlane.xlu0 %264
    %v266 = vsub.f32 %v261, %v265
    %v267 = vmul.f32 %v266, 1.442695
    %v268 = vpow.pop %v267
    %269 = vadd.xlane.f32.xlu0 %v268
    %v270 = vpop.xlane.xlu0 %269
    %v271 = vlog2.pop %v270
    %v272 = vmul.f32 %v271, 0.6931472
    %v273 = vsub.f32 %v266, %v272
    %vm274 = vcmask 15360
    %275 = vst.msk [vmem:[%s5] sm:$0xff] %vm274, %v273
    // Predicated region
    $region34: #{tpu_custom_call.1} parent=1 // pred_check
      _
    $region35: #{tpu_custom_call.1} parent=1 // pred_check_branch
      %277 = sbr.rel (0) target = $region37
    $region36: #{tpu_custom_call.1} parent=1 // pred_region
      _
    $region37: #{tpu_custom_call.1} parent=1 // pred_fallthru
      _
    // Predicated region
    $region38: #{tpu_custom_call.1} parent=1 // pred_check
      _
    $region39: #{tpu_custom_call.1} parent=1 // pred_check_branch
      %279 = sbr.rel (0) target = $region41
    $region40: #{tpu_custom_call.1} parent=1 // pred_region
      _
    $region41: #{tpu_custom_call.1} parent=1 // pred_fallthru
      _
    %280 = vsyncpa [#allocation3], 1
    %281 = vsyncpa [#allocation5], 1

</llo_original>
